<compile_context>
chip_gen: v5e
topology: v5e:2x2
jax: 0.10.0
libtpu: 0.0.40
codegen_flags: <defaults>
</compile_context>

<pallas_src>
import functools

import jax
import jax.numpy as jnp
from jax.experimental import pallas as pl
from jax.experimental.pallas import tpu as pltpu

EPS = 1e-5  # PyTorch InstanceNorm2d default eps


def _grid_attention_kernel(x_ref, g_ref, u_ref, th_ref, ph_ref, ww_ref, psi_ref,
                           aff_ref, wy_ref, sig_ref, *, C_int):
    """One grid step = one batch element.

    x_ref   : (1, C_in, P)   current-batch activations
    g_ref   : (1, C_g,  Pg)  current-batch gating signal
    u_ref   : (Pg, P)        bilinear interpolation matrix (shared across batch)
    th_ref  : (C_int, C_in)  theta 1x1 conv weight
    ph_ref  : (C_int, C_g)   phi   1x1 conv weight
    ww_ref  : (C_in,  C_in)  W     1x1 conv weight
    psi_ref : (C_int, 1)     psi   1x1 conv weight (as a column)
    aff_ref : (2*C_int+1+C_in, 2)  packed InstanceNorm affine (col0=gamma, col1=beta):
              rows [0:C_int]=theta, [C_int:2C_int]=phi, [2C_int]=psi, rest=W
    """
    def inorm(t, gamma, beta):
        # Two-pass statistics over the lane (spatial) axis; affine folded into one FMA.
        mu = jnp.mean(t, axis=-1, keepdims=True)
        var = jnp.mean(jnp.square(t - mu), axis=-1, keepdims=True)
        scale = gamma * jax.lax.rsqrt(var + EPS)
        shift = beta - mu * scale
        return t * scale + shift

    x = x_ref[0]                                                   # (C_in, P)
    g = g_ref[0]                                                   # (C_g,  Pg)
    aff = aff_ref[...]

    # Bilinear upsample folded into an MXU matmul (exact: resize is linear).
    g_up = jnp.dot(g, u_ref[...], preferred_element_type=jnp.float32)     # (C_g, P)

    # theta / phi 1x1 convs as two separate MXU dots.
    theta_x = jnp.dot(th_ref[...], x, preferred_element_type=jnp.float32)    # (C_int, P)
    phi_g = jnp.dot(ph_ref[...], g_up, preferred_element_type=jnp.float32)   # (C_int, P)

    theta_x = inorm(theta_x, aff[0:C_int, 0:1], aff[0:C_int, 1:2])
    phi_g = inorm(phi_g, aff[C_int:2 * C_int, 0:1], aff[C_int:2 * C_int, 1:2])

    # f = leaky_relu(theta_x + phi_g, 0.2)
    f = theta_x + phi_g
    f = jnp.where(f >= 0.0, f, 0.2 * f)

    # psi: 1-row projection, vectorized (broadcast multiply + sublane reduction).
    psi = jnp.sum(f * psi_ref[...], axis=0, keepdims=True)                   # (1, P)
    psi = inorm(psi, aff[2 * C_int:2 * C_int + 1, 0:1],
                aff[2 * C_int:2 * C_int + 1, 1:2])
    sig = jax.nn.sigmoid(psi)
    sig_ref[0] = sig

    # y = sig * x (broadcast over channels); W branch: 1x1 conv + InstanceNorm.
    y = sig * x
    wy = jnp.dot(ww_ref[...], y, preferred_element_type=jnp.float32)         # (C_in, P)
    wy = inorm(wy, aff[2 * C_int + 1:, 0:1], aff[2 * C_int + 1:, 1:2])
    wy_ref[0] = wy


def grid_attention_forward(x, g, params):
    """x: (B, C_in, H, W); g: (B, C_g, Hg, Wg). Returns (W_y, sigm_psi_f) in NCHW."""
    B, C_in, H, W = x.shape
    _, C_g, Hg, Wg = g.shape
    P = H * W
    Pg = Hg * Wg

    (theta_w, phi_w, psi_w, W_w,
     theta_gm, theta_bt, phi_gm, phi_bt, psi_gm, psi_bt, W_gm, W_bt) = params
    C_int = theta_w.shape[0]

    # --- layout: (B, C, H*W) — free reshape of NCHW, no transposes ---
    x_flat = x.astype(jnp.float32).reshape(B, C_in, P)
    g_flat = g.astype(jnp.float32).reshape(B, C_g, Pg)

    # --- bilinear (align_corners=False) interpolation matrix, shared across batch,
    #     built exactly as jax.image.resize of the identity basis. ---
    eye = jnp.eye(Pg, dtype=jnp.float32).reshape(Pg, Hg, Wg)
    U = jax.image.resize(eye, (Pg, H, W), method="bilinear").reshape(Pg, P)

    # --- psi weight as a (C_int, 1) column for broadcast multiply in-kernel ---
    psi_col = psi_w.reshape(1, C_int).T.astype(jnp.float32)

    # --- pack all InstanceNorm affine params: col 0 = gamma, col 1 = beta ---
    affine_all = jnp.concatenate([
        jnp.concatenate([theta_gm, theta_bt], axis=1),   # rows [0:C_int]
        jnp.concatenate([phi_gm, phi_bt], axis=1),       # rows [C_int:2*C_int]
        jnp.concatenate([psi_gm, psi_bt], axis=1),       # row  [2*C_int]
        jnp.concatenate([W_gm, W_bt], axis=1),           # rows [2*C_int+1:]
    ], axis=0).astype(jnp.float32)                       # (2*C_int + 1 + C_in, 2)

    kernel = functools.partial(_grid_attention_kernel, C_int=C_int)

    wy_flat, sig_flat = pl.pallas_call(
        kernel,
        out_shape=(
            jax.ShapeDtypeStruct((B, C_in, P), jnp.float32),
            jax.ShapeDtypeStruct((B, 1, P), jnp.float32),
        ),
        grid_spec=pltpu.PrefetchScalarGridSpec(
            num_scalar_prefetch=0,
            grid=(B,),
            in_specs=[
                pl.BlockSpec((1, C_in, P), lambda b: (b, 0, 0)),       # x (per batch)
                pl.BlockSpec((1, C_g, Pg), lambda b: (b, 0, 0)),       # g (per batch)
                pl.BlockSpec((Pg, P), lambda b: (0, 0)),               # U (shared)
                pl.BlockSpec((C_int, C_in), lambda b: (0, 0)),         # theta weight
                pl.BlockSpec((C_int, C_g), lambda b: (0, 0)),          # phi weight
                pl.BlockSpec((C_in, C_in), lambda b: (0, 0)),          # W weight
                pl.BlockSpec((C_int, 1), lambda b: (0, 0)),            # psi weight col
                pl.BlockSpec((2 * C_int + 1 + C_in, 2), lambda b: (0, 0)),  # affine
            ],
            out_specs=(
                pl.BlockSpec((1, C_in, P), lambda b: (b, 0, 0)),       # W_y
                pl.BlockSpec((1, 1, P), lambda b: (b, 0, 0)),          # sigmoid(psi)
            ),
        ),
        compiler_params=pltpu.CompilerParams(
            dimension_semantics=("parallel",),        # batch steps independent (megacore)
            vmem_limit_bytes=32 * 1024 * 1024,        # explicit, plenty of headroom
        ),
    )(x_flat, g_flat, U, theta_w.astype(jnp.float32), phi_w.astype(jnp.float32),
      W_w.astype(jnp.float32), psi_col, affine_all)

    wy = wy_flat.reshape(B, C_in, H, W)
    sig = sig_flat.reshape(B, 1, H, W)
    return wy, sig


def make_params(key, in_channels, gating_channels):
    """Deterministic synthetic parameters (spectral norm applied exactly via SVD)."""
    inter_channels = in_channels // 2
    if inter_channels == 0:
        inter_channels = 1

    k1, k2, k3, k4 = jax.random.split(key, 4)

    def sn_weight(k, c_out, c_in):
        w = jax.random.normal(k, (c_out, c_in), dtype=jnp.float32) * 0.2
        sigma = jnp.linalg.svd(w, compute_uv=False)[0]
        return w / sigma

    theta_w = sn_weight(k1, inter_channels, in_channels)
    phi_w = sn_weight(k2, inter_channels, gating_channels)
    psi_w = sn_weight(k3, 1, inter_channels)
    W_w = sn_weight(k4, in_channels, in_channels)

    # InstanceNorm2d(affine=True) default init: gamma=1, beta=0
    def affine(c):
        return jnp.ones((c, 1), jnp.float32), jnp.zeros((c, 1), jnp.float32)

    theta_gm, theta_bt = affine(inter_channels)
    phi_gm, phi_bt = affine(inter_channels)
    psi_gm, psi_bt = affine(1)
    W_gm, W_bt = affine(in_channels)

    return (theta_w, phi_w, psi_w, W_w,
            theta_gm, theta_bt, phi_gm, phi_bt, psi_gm, psi_bt, W_gm, W_bt)


def reference_forward(x, g, params):
    """Pure-JAX reference (same math) for a correctness check."""
    (theta_w, phi_w, psi_w, W_w,
     theta_gm, theta_bt, phi_gm, phi_bt, psi_gm, psi_bt, W_gm, W_bt) = params
    B, C_in, H, W = x.shape
    C_g = g.shape[1]
    P = H * W
    # NOTE: jax.image.resize 'bilinear' == align_corners=False (half-pixel), matching
    # modern F.upsample / F.interpolate defaults.
    g_up = jax.image.resize(g, (B, C_g, H, W), method="bilinear")
    xf = x.reshape(B, C_in, P)
    gf = g_up.reshape(B, C_g, P)

    def inorm(t, gm, bt):
        mu = jnp.mean(t, axis=-1, keepdims=True)
        var = jnp.mean((t - mu) ** 2, axis=-1, keepdims=True)
        return (t - mu) / jnp.sqrt(var + EPS) * gm + bt

    theta_x = inorm(jnp.einsum('oc,bcp->bop', theta_w, xf), theta_gm, theta_bt)
    phi_g = inorm(jnp.einsum('oc,bcp->bop', phi_w, gf), phi_gm, phi_bt)
    f = theta_x + phi_g
    f = jnp.where(f >= 0, f, 0.2 * f)
    psi_f = inorm(jnp.einsum('oc,bcp->bop', psi_w, f), psi_gm, psi_bt)
    sig = jax.nn.sigmoid(psi_f)
    y = sig * xf
    wy = inorm(jnp.einsum('oc,bcp->bop', W_w, y), W_gm, W_bt)
    return wy.reshape(B, C_in, H, W), sig.reshape(B, 1, H, W)


if __name__ == "__main__":
    B, C_in, H, W = 2, 4, 16, 16
    C_g, Hg, Wg = 8, 8, 8

    key = jax.random.PRNGKey(0)
    kx, kg, kp = jax.random.split(key, 3)
    x = jax.random.normal(kx, (B, C_in, H, W), dtype=jnp.float32)
    g = jax.random.normal(kg, (B, C_g, Hg, Wg), dtype=jnp.float32)
    params = make_params(kp, C_in, C_g)

    wy, sig = grid_attention_forward(x, g, params)
    jax.block_until_ready((wy, sig))

    wy_ref, sig_ref = reference_forward(x, g, params)
    assert wy.shape == (B, C_in, H, W) and sig.shape == (B, 1, H, W)
    assert jnp.allclose(wy, wy_ref, rtol=1e-4, atol=1e-4)
    assert jnp.allclose(sig, sig_ref, rtol=1e-4, atol=1e-4)

    print("KERNEL_OK")
</pallas_src>

<mosaic_0001>
module attributes {stable_mosaic.version = 11 : i64} {
  func.func @_grid_attention_kernel(%arg0: i32, %arg1: memref<1x4x256xf32, #tpu.memory_space<vmem>>, %arg2: memref<1x8x64xf32, #tpu.memory_space<vmem>>, %arg3: memref<64x256xf32, #tpu.memory_space<vmem>>, %arg4: memref<2x4xf32, #tpu.memory_space<vmem>>, %arg5: memref<2x8xf32, #tpu.memory_space<vmem>>, %arg6: memref<4x4xf32, #tpu.memory_space<vmem>>, %arg7: memref<2x1xf32, #tpu.memory_space<vmem>>, %arg8: memref<9x2xf32, #tpu.memory_space<vmem>>, %arg9: memref<1x4x256xf32, #tpu.memory_space<vmem>>, %arg10: memref<1x1x256xf32, #tpu.memory_space<vmem>>) attributes {dimension_semantics = [#tpu.dimension_semantics<parallel>], iteration_bounds = array<i64: 2>, scalar_prefetch = 0 : i64, scratch_operands = 0 : i64, tpu.core_type = #tpu.core_type<tc>, window_params = [{transform_indices = @transform_0, window_bounds = array<i64: 1, 4, 256>}, {transform_indices = @transform_1, window_bounds = array<i64: 1, 8, 64>}, {pipeline_mode = #tpu.pipeline_mode<synchronous>, transform_indices = @transform_2, window_bounds = array<i64: 64, 256>}, {pipeline_mode = #tpu.pipeline_mode<synchronous>, transform_indices = @transform_3, window_bounds = array<i64: 2, 4>}, {pipeline_mode = #tpu.pipeline_mode<synchronous>, transform_indices = @transform_4, window_bounds = array<i64: 2, 8>}, {pipeline_mode = #tpu.pipeline_mode<synchronous>, transform_indices = @transform_5, window_bounds = array<i64: 4, 4>}, {pipeline_mode = #tpu.pipeline_mode<synchronous>, transform_indices = @transform_6, window_bounds = array<i64: 2, 1>}, {pipeline_mode = #tpu.pipeline_mode<synchronous>, transform_indices = @transform_7, window_bounds = array<i64: 9, 2>}, {transform_indices = @transform_8, window_bounds = array<i64: 1, 4, 256>}, {transform_indices = @transform_9, window_bounds = array<i64: 1, 1, 256>}]} {
    %c0 = arith.constant 0 : index
    %c0_0 = arith.constant 0 : index
    %c0_1 = arith.constant 0 : index
    %0 = vector.load %arg1[%c0, %c0_0, %c0_1] : memref<1x4x256xf32, #tpu.memory_space<vmem>>, vector<1x4x256xf32>
    %1 = vector.shape_cast %0 : vector<1x4x256xf32> to vector<4x256xf32>
    %c0_2 = arith.constant 0 : index
    %c0_3 = arith.constant 0 : index
    %c0_4 = arith.constant 0 : index
    %2 = vector.load %arg2[%c0_2, %c0_3, %c0_4] : memref<1x8x64xf32, #tpu.memory_space<vmem>>, vector<1x8x64xf32>
    %3 = vector.shape_cast %2 : vector<1x8x64xf32> to vector<8x64xf32>
    %c0_5 = arith.constant 0 : index
    %c0_6 = arith.constant 0 : index
    %4 = vector.load %arg8[%c0_5, %c0_6] : memref<9x2xf32, #tpu.memory_space<vmem>>, vector<9x2xf32>
    %c0_7 = arith.constant 0 : index
    %c0_8 = arith.constant 0 : index
    %5 = vector.load %arg3[%c0_7, %c0_8] : memref<64x256xf32, #tpu.memory_space<vmem>>, vector<64x256xf32>
    %cst = arith.constant dense<0.000000e+00> : vector<8x256xf32>
    %6 = tpu.matmul %3, %5, %cst {dimension_numbers = #tpu.dot_dimension_numbers<[1], [0], [0], [1], [0, 0, 1, 1], [], []>} : vector<8x64xf32>, vector<64x256xf32>, vector<8x256xf32> -> vector<8x256xf32>
    %c0_9 = arith.constant 0 : index
    %c0_10 = arith.constant 0 : index
    %7 = vector.load %arg4[%c0_9, %c0_10] : memref<2x4xf32, #tpu.memory_space<vmem>>, vector<2x4xf32>
    %cst_11 = arith.constant dense<0.000000e+00> : vector<2x256xf32>
    %8 = tpu.matmul %7, %1, %cst_11 {dimension_numbers = #tpu.dot_dimension_numbers<[1], [0], [0], [1], [0, 0, 1, 1], [], []>} : vector<2x4xf32>, vector<4x256xf32>, vector<2x256xf32> -> vector<2x256xf32>
    %c0_12 = arith.constant 0 : index
    %c0_13 = arith.constant 0 : index
    %9 = vector.load %arg5[%c0_12, %c0_13] : memref<2x8xf32, #tpu.memory_space<vmem>>, vector<2x8xf32>
    %cst_14 = arith.constant dense<0.000000e+00> : vector<2x256xf32>
    %10 = tpu.matmul %9, %6, %cst_14 {dimension_numbers = #tpu.dot_dimension_numbers<[1], [0], [0], [1], [0, 0, 1, 1], [], []>} : vector<2x8xf32>, vector<8x256xf32>, vector<2x256xf32> -> vector<2x256xf32>
    %11 = vector.extract_strided_slice %4 {offsets = [0, 0], sizes = [2, 1], strides = [1, 1]} : vector<9x2xf32> to vector<2x1xf32>
    %12 = vector.extract_strided_slice %4 {offsets = [0, 1], sizes = [2, 1], strides = [1, 1]} : vector<9x2xf32> to vector<2x1xf32>
    %cst_15 = arith.constant dense<0.000000e+00> : vector<2xf32>
    %13 = vector.multi_reduction <add>, %8, %cst_15 [1] : vector<2x256xf32> to vector<2xf32>
    %14 = vector.shape_cast %13 : vector<2xf32> to vector<2x1xf32>
    %cst_16 = arith.constant 2.560000e+02 : f32
    %15 = vector.broadcast %cst_16 : f32 to vector<2x1xf32>
    %16 = arith.divf %14, %15 : vector<2x1xf32>
    %17 = vector.broadcast %16 : vector<2x1xf32> to vector<2x256xf32>
    %18 = arith.subf %8, %17 : vector<2x256xf32>
    %19 = arith.mulf %18, %18 : vector<2x256xf32>
    %cst_17 = arith.constant dense<0.000000e+00> : vector<2xf32>
    %20 = vector.multi_reduction <add>, %19, %cst_17 [1] : vector<2x256xf32> to vector<2xf32>
    %21 = vector.shape_cast %20 : vector<2xf32> to vector<2x1xf32>
    %cst_18 = arith.constant 2.560000e+02 : f32
    %22 = vector.broadcast %cst_18 : f32 to vector<2x1xf32>
    %23 = arith.divf %21, %22 : vector<2x1xf32>
    %cst_19 = arith.constant 9.99999974E-6 : f32
    %24 = vector.broadcast %cst_19 : f32 to vector<2x1xf32>
    %25 = arith.addf %23, %24 : vector<2x1xf32>
    %26 = math.rsqrt %25 : vector<2x1xf32>
    %27 = arith.mulf %11, %26 : vector<2x1xf32>
    %28 = arith.mulf %16, %27 : vector<2x1xf32>
    %29 = arith.subf %12, %28 : vector<2x1xf32>
    %30 = vector.broadcast %27 : vector<2x1xf32> to vector<2x256xf32>
    %31 = arith.mulf %8, %30 : vector<2x256xf32>
    %32 = vector.broadcast %29 : vector<2x1xf32> to vector<2x256xf32>
    %33 = arith.addf %31, %32 : vector<2x256xf32>
    %34 = vector.extract_strided_slice %4 {offsets = [2, 0], sizes = [2, 1], strides = [1, 1]} : vector<9x2xf32> to vector<2x1xf32>
    %35 = vector.extract_strided_slice %4 {offsets = [2, 1], sizes = [2, 1], strides = [1, 1]} : vector<9x2xf32> to vector<2x1xf32>
    %cst_20 = arith.constant dense<0.000000e+00> : vector<2xf32>
    %36 = vector.multi_reduction <add>, %10, %cst_20 [1] : vector<2x256xf32> to vector<2xf32>
    %37 = vector.shape_cast %36 : vector<2xf32> to vector<2x1xf32>
    %cst_21 = arith.constant 2.560000e+02 : f32
    %38 = vector.broadcast %cst_21 : f32 to vector<2x1xf32>
    %39 = arith.divf %37, %38 : vector<2x1xf32>
    %40 = vector.broadcast %39 : vector<2x1xf32> to vector<2x256xf32>
    %41 = arith.subf %10, %40 : vector<2x256xf32>
    %42 = arith.mulf %41, %41 : vector<2x256xf32>
    %cst_22 = arith.constant dense<0.000000e+00> : vector<2xf32>
    %43 = vector.multi_reduction <add>, %42, %cst_22 [1] : vector<2x256xf32> to vector<2xf32>
    %44 = vector.shape_cast %43 : vector<2xf32> to vector<2x1xf32>
    %cst_23 = arith.constant 2.560000e+02 : f32
    %45 = vector.broadcast %cst_23 : f32 to vector<2x1xf32>
    %46 = arith.divf %44, %45 : vector<2x1xf32>
    %cst_24 = arith.constant 9.99999974E-6 : f32
    %47 = vector.broadcast %cst_24 : f32 to vector<2x1xf32>
    %48 = arith.addf %46, %47 : vector<2x1xf32>
    %49 = math.rsqrt %48 : vector<2x1xf32>
    %50 = arith.mulf %34, %49 : vector<2x1xf32>
    %51 = arith.mulf %39, %50 : vector<2x1xf32>
    %52 = arith.subf %35, %51 : vector<2x1xf32>
    %53 = vector.broadcast %50 : vector<2x1xf32> to vector<2x256xf32>
    %54 = arith.mulf %10, %53 : vector<2x256xf32>
    %55 = vector.broadcast %52 : vector<2x1xf32> to vector<2x256xf32>
    %56 = arith.addf %54, %55 : vector<2x256xf32>
    %57 = arith.addf %33, %56 : vector<2x256xf32>
    %cst_25 = arith.constant 0.000000e+00 : f32
    %58 = vector.broadcast %cst_25 : f32 to vector<2x256xf32>
    %59 = arith.cmpf oge, %57, %58 : vector<2x256xf32>
    %cst_26 = arith.constant 2.000000e-01 : f32
    %60 = vector.broadcast %cst_26 : f32 to vector<2x256xf32>
    %61 = arith.mulf %60, %57 : vector<2x256xf32>
    %62 = arith.select %59, %57, %61 : vector<2x256xi1>, vector<2x256xf32>
    %c0_27 = arith.constant 0 : index
    %c0_28 = arith.constant 0 : index
    %63 = vector.load %arg7[%c0_27, %c0_28] : memref<2x1xf32, #tpu.memory_space<vmem>>, vector<2x1xf32>
    %64 = vector.broadcast %63 : vector<2x1xf32> to vector<2x256xf32>
    %65 = arith.mulf %62, %64 : vector<2x256xf32>
    %cst_29 = arith.constant dense<0.000000e+00> : vector<256xf32>
    %66 = vector.multi_reduction <add>, %65, %cst_29 [0] : vector<2x256xf32> to vector<256xf32>
    %67 = vector.shape_cast %66 : vector<256xf32> to vector<1x256xf32>
    %68 = vector.extract_strided_slice %4 {offsets = [4, 0], sizes = [1, 1], strides = [1, 1]} : vector<9x2xf32> to vector<1x1xf32>
    %69 = vector.extract_strided_slice %4 {offsets = [4, 1], sizes = [1, 1], strides = [1, 1]} : vector<9x2xf32> to vector<1x1xf32>
    %cst_30 = arith.constant dense<0.000000e+00> : vector<1xf32>
    %70 = vector.multi_reduction <add>, %67, %cst_30 [1] : vector<1x256xf32> to vector<1xf32>
    %71 = vector.shape_cast %70 : vector<1xf32> to vector<1x1xf32>
    %cst_31 = arith.constant 2.560000e+02 : f32
    %72 = vector.broadcast %cst_31 : f32 to vector<1x1xf32>
    %73 = arith.divf %71, %72 : vector<1x1xf32>
    %74 = vector.broadcast %73 : vector<1x1xf32> to vector<1x256xf32>
    %75 = arith.subf %67, %74 : vector<1x256xf32>
    %76 = arith.mulf %75, %75 : vector<1x256xf32>
    %cst_32 = arith.constant dense<0.000000e+00> : vector<1xf32>
    %77 = vector.multi_reduction <add>, %76, %cst_32 [1] : vector<1x256xf32> to vector<1xf32>
    %78 = vector.shape_cast %77 : vector<1xf32> to vector<1x1xf32>
    %cst_33 = arith.constant 2.560000e+02 : f32
    %79 = vector.broadcast %cst_33 : f32 to vector<1x1xf32>
    %80 = arith.divf %78, %79 : vector<1x1xf32>
    %cst_34 = arith.constant 9.99999974E-6 : f32
    %81 = vector.broadcast %cst_34 : f32 to vector<1x1xf32>
    %82 = arith.addf %80, %81 : vector<1x1xf32>
    %83 = math.rsqrt %82 : vector<1x1xf32>
    %84 = arith.mulf %68, %83 : vector<1x1xf32>
    %85 = arith.mulf %73, %84 : vector<1x1xf32>
    %86 = arith.subf %69, %85 : vector<1x1xf32>
    %87 = vector.broadcast %84 : vector<1x1xf32> to vector<1x256xf32>
    %88 = arith.mulf %67, %87 : vector<1x256xf32>
    %89 = vector.broadcast %86 : vector<1x1xf32> to vector<1x256xf32>
    %90 = arith.addf %88, %89 : vector<1x256xf32>
    %91 = arith.negf %90 : vector<1x256xf32>
    %92 = math.exp %91 : vector<1x256xf32>
    %cst_35 = arith.constant 1.000000e+00 : f32
    %93 = vector.broadcast %cst_35 : f32 to vector<1x256xf32>
    %94 = arith.addf %93, %92 : vector<1x256xf32>
    %95 = arith.divf %93, %94 : vector<1x256xf32>
    %c0_36 = arith.constant 0 : index
    %c0_37 = arith.constant 0 : index
    %c0_38 = arith.constant 0 : index
    %96 = vector.load %arg10[%c0_36, %c0_37, %c0_38] : memref<1x1x256xf32, #tpu.memory_space<vmem>>, vector<1x1x256xf32>
    %97 = vector.shape_cast %96 : vector<1x1x256xf32> to vector<1x256xf32>
    %98 = vector.shape_cast %95 : vector<1x256xf32> to vector<1x1x256xf32>
    tpu.vector_store %arg10[%c0_36, %c0_37, %c0_38], %98 {strides = array<i32>} : memref<1x1x256xf32, #tpu.memory_space<vmem>>, vector<1x1x256xf32>,
    %99 = vector.broadcast %95 : vector<1x256xf32> to vector<4x256xf32>
    %100 = arith.mulf %99, %1 : vector<4x256xf32>
    %c0_39 = arith.constant 0 : index
    %c0_40 = arith.constant 0 : index
    %101 = vector.load %arg6[%c0_39, %c0_40] : memref<4x4xf32, #tpu.memory_space<vmem>>, vector<4x4xf32>
    %cst_41 = arith.constant dense<0.000000e+00> : vector<4x256xf32>
    %102 = tpu.matmul %101, %100, %cst_41 {dimension_numbers = #tpu.dot_dimension_numbers<[1], [0], [0], [1], [0, 0, 1, 1], [], []>} : vector<4x4xf32>, vector<4x256xf32>, vector<4x256xf32> -> vector<4x256xf32>
    %103 = vector.extract_strided_slice %4 {offsets = [5, 0], sizes = [4, 1], strides = [1, 1]} : vector<9x2xf32> to vector<4x1xf32>
    %104 = vector.extract_strided_slice %4 {offsets = [5, 1], sizes = [4, 1], strides = [1, 1]} : vector<9x2xf32> to vector<4x1xf32>
    %cst_42 = arith.constant dense<0.000000e+00> : vector<4xf32>
    %105 = vector.multi_reduction <add>, %102, %cst_42 [1] : vector<4x256xf32> to vector<4xf32>
    %106 = vector.shape_cast %105 : vector<4xf32> to vector<4x1xf32>
    %cst_43 = arith.constant 2.560000e+02 : f32
    %107 = vector.broadcast %cst_43 : f32 to vector<4x1xf32>
    %108 = arith.divf %106, %107 : vector<4x1xf32>
    %109 = vector.broadcast %108 : vector<4x1xf32> to vector<4x256xf32>
    %110 = arith.subf %102, %109 : vector<4x256xf32>
    %111 = arith.mulf %110, %110 : vector<4x256xf32>
    %cst_44 = arith.constant dense<0.000000e+00> : vector<4xf32>
    %112 = vector.multi_reduction <add>, %111, %cst_44 [1] : vector<4x256xf32> to vector<4xf32>
    %113 = vector.shape_cast %112 : vector<4xf32> to vector<4x1xf32>
    %cst_45 = arith.constant 2.560000e+02 : f32
    %114 = vector.broadcast %cst_45 : f32 to vector<4x1xf32>
    %115 = arith.divf %113, %114 : vector<4x1xf32>
    %cst_46 = arith.constant 9.99999974E-6 : f32
    %116 = vector.broadcast %cst_46 : f32 to vector<4x1xf32>
    %117 = arith.addf %115, %116 : vector<4x1xf32>
    %118 = math.rsqrt %117 : vector<4x1xf32>
    %119 = arith.mulf %103, %118 : vector<4x1xf32>
    %120 = arith.mulf %108, %119 : vector<4x1xf32>
    %121 = arith.subf %104, %120 : vector<4x1xf32>
    %122 = vector.broadcast %119 : vector<4x1xf32> to vector<4x256xf32>
    %123 = arith.mulf %102, %122 : vector<4x256xf32>
    %124 = vector.broadcast %121 : vector<4x1xf32> to vector<4x256xf32>
    %125 = arith.addf %123, %124 : vector<4x256xf32>
    %c0_47 = arith.constant 0 : index
    %c0_48 = arith.constant 0 : index
    %c0_49 = arith.constant 0 : index
    %126 = vector.load %arg9[%c0_47, %c0_48, %c0_49] : memref<1x4x256xf32, #tpu.memory_space<vmem>>, vector<1x4x256xf32>
    %127 = vector.shape_cast %126 : vector<1x4x256xf32> to vector<4x256xf32>
    %128 = vector.shape_cast %125 : vector<4x256xf32> to vector<1x4x256xf32>
    tpu.vector_store %arg9[%c0_47, %c0_48, %c0_49], %128 {strides = array<i32>} : memref<1x4x256xf32, #tpu.memory_space<vmem>>, vector<1x4x256xf32>,
    return
  }
  func.func @transform_0(%arg0: i32) -> (i32, i32, i32) {
    %c0_i32 = arith.constant 0 : i32
    %c0_i32_0 = arith.constant 0 : i32
    %c0_i32_1 = arith.constant 0 : i32
    return %arg0, %c0_i32, %c0_i32_0 : i32, i32, i32
  }
  func.func @transform_1(%arg0: i32) -> (i32, i32, i32) {
    %c0_i32 = arith.constant 0 : i32
    %c0_i32_0 = arith.constant 0 : i32
    %c0_i32_1 = arith.constant 0 : i32
    return %arg0, %c0_i32, %c0_i32_0 : i32, i32, i32
  }
  func.func @transform_2(%arg0: i32) -> (i32, i32) {
    %c0_i32 = arith.constant 0 : i32
    %c0_i32_0 = arith.constant 0 : i32
    %c0_i32_1 = arith.constant 0 : i32
    return %c0_i32, %c0_i32_0 : i32, i32
  }
  func.func @transform_3(%arg0: i32) -> (i32, i32) {
    %c0_i32 = arith.constant 0 : i32
    %c0_i32_0 = arith.constant 0 : i32
    %c0_i32_1 = arith.constant 0 : i32
    return %c0_i32, %c0_i32_0 : i32, i32
  }
  func.func @transform_4(%arg0: i32) -> (i32, i32) {
    %c0_i32 = arith.constant 0 : i32
    %c0_i32_0 = arith.constant 0 : i32
    %c0_i32_1 = arith.constant 0 : i32
    return %c0_i32, %c0_i32_0 : i32, i32
  }
  func.func @transform_5(%arg0: i32) -> (i32, i32) {
    %c0_i32 = arith.constant 0 : i32
    %c0_i32_0 = arith.constant 0 : i32
    %c0_i32_1 = arith.constant 0 : i32
    return %c0_i32, %c0_i32_0 : i32, i32
  }
  func.func @transform_6(%arg0: i32) -> (i32, i32) {
    %c0_i32 = arith.constant 0 : i32
    %c0_i32_0 = arith.constant 0 : i32
    %c0_i32_1 = arith.constant 0 : i32
    return %c0_i32, %c0_i32_0 : i32, i32
  }
  func.func @transform_7(%arg0: i32) -> (i32, i32) {
    %c0_i32 = arith.constant 0 : i32
    %c0_i32_0 = arith.constant 0 : i32
    %c0_i32_1 = arith.constant 0 : i32
    return %c0_i32, %c0_i32_0 : i32, i32
  }
  func.func @transform_8(%arg0: i32) -> (i32, i32, i32) {
    %c0_i32 = arith.constant 0 : i32
    %c0_i32_0 = arith.constant 0 : i32
    %c0_i32_1 = arith.constant 0 : i32
    return %arg0, %c0_i32, %c0_i32_0 : i32, i32, i32
  }
  func.func @transform_9(%arg0: i32) -> (i32, i32, i32) {
    %c0_i32 = arith.constant 0 : i32
    %c0_i32_0 = arith.constant 0 : i32
    %c0_i32_1 = arith.constant 0 : i32
    return %arg0, %c0_i32, %c0_i32_0 : i32, i32, i32
  }
}

</mosaic_0001>

<llo_original>
// kernel: tpu_custom_call.1
$region0: #{tpu_custom_call.1}
  #allocation0 [shape = 'u32[]', space=smem, size = 0x4, offset = 0x4, fixed_abs, tag = 'smem constant byte address 0x4 - core index']
  #allocation1 [shape = 'u32[72,128]{1,0:T(1,128)}', space=vmem, size = 0x9000, scoped, tag = 'internal scratch']
  %s0 = inlined_call_operand.vmem [shape: f32[2,4,256], index: 0, kind: input, shape index: {}]
  %s1 = inlined_call_operand.hbm [shape: f32[2,8,64], index: 1, kind: input, shape index: {}]
  %s2 = inlined_call_operand.hbm [shape: f32[64,256], index: 2, kind: input, shape index: {}]
  %s3 = inlined_call_operand.vmem [shape: f32[2,4], index: 3, kind: input, shape index: {}]
  %s4 = inlined_call_operand.vmem [shape: f32[2,8], index: 4, kind: input, shape index: {}]
  %s5 = inlined_call_operand.hbm [shape: f32[4,4], index: 5, kind: input, shape index: {}]
  %s6 = inlined_call_operand.vmem [shape: f32[2,1], index: 6, kind: input, shape index: {}]
  %s7 = inlined_call_operand.vmem [shape: f32[9,2], index: 7, kind: input, shape index: {}]
  %s8 = inlined_call_operand.hbm [shape: f32[2,4,256], index: 8, kind: output, shape index: {0}]
  %s9 = inlined_call_operand.hbm [shape: f32[2,1,256], index: 9, kind: output, shape index: {1}]
  %10 = xla_tuple %s8, %s9
  %s11 = sld [smem:[#allocation0]]
  $region85: #{tpu_custom_call.1} parent=0
    _
  %s13 = ssub.s32 1, %s11
  %s14 = scalar_select 0, %s13, %s11
  $region1: #{tpu_custom_call.1} parent=0
    #allocation2 [shape = 'u8[8192]{0}', space=vmem, size = 0x2000, scoped, tag = 'input window, operand 1']
    #allocation3 [shape = 's32[2]{0}', space=sflag, size = 0x8, scoped, tag = 'scoped memory for tpu_custom_call.1']
    #allocation4 [shape = 's32[2]{0}', space=sflag, size = 0x8, scoped, tag = 'scoped memory for tpu_custom_call.1']
    #allocation5 [shape = 'u8[65536]{0}', space=vmem, size = 0x10000, scoped, tag = 'input window, operand 2, single buffered']
    #allocation6 [shape = 's32[1]{0}', space=sflag, size = 0x4, scoped, tag = 'scoped memory for tpu_custom_call.1']
    #allocation7 [shape = 'u8[2048]{0}', space=vmem, size = 0x800, scoped, tag = 'input window, operand 5, single buffered']
    #allocation8 [shape = 'u8[8192]{0}', space=vmem, size = 0x2000, scoped, tag = 'output window, operand 0']
    #allocation9 [shape = 'u8[2048]{0}', space=vmem, size = 0x800, scoped, tag = 'output window, operand 1']
    #allocation10 [shape = 's32[2]{0}', space=sflag, size = 0x8, scoped, tag = 'scoped memory for tpu_custom_call.1']
    %15 = vsyncpa [#allocation3], 0
    %s16 = scalar_lea.sflag [#allocation3], 1
    %17 = vsyncpa %s16, 0
    %18 = vsyncpa [#allocation6], 0
    %19 = vsyncpa [#allocation4], 0
    %s20 = scalar_lea.sflag [#allocation4], 1
    %21 = vsyncpa %s20, 0
    %22 = vsyncpa [#allocation10], 0
    %s23 = scalar_lea.sflag [#allocation10], 1
    %24 = vsyncpa %s23, 0
    loop: start=0, step=1, limit=4
    $region2: #{tpu_custom_call.1} parent=1 // loop_pre_header
      _
    $region3: #{tpu_custom_call.1} parent=1 // loop_header
      %s26 = sphi 0, %s30
      %p27 = scmp.ge.s32.totalorder %s26, 4
      %s36 = sphi 0, %s38
      %s39 = sphi 0, %s36
      %s40 = sphi 0, %s39
      %s56 = sphi 0, %s40
      %s62 = sphi 0, %s64
      %s65 = sphi 0, %s62
      %s66 = sphi 0, %s65
      %s82 = sphi 0, %s66
      %s86 = sphi 0, %s86
      %s88 = sphi 0, %s86
      %s89 = sphi 0, %s88
      %s103 = sphi 0, %s89
      %s107 = sphi 0, %s107
      %s109 = sphi 0, %s107
      %s110 = sphi 0, %s109
      %s124 = sphi 0, %s110
      %s128 = sphi 0, %s128
      %s130 = sphi 0, %s128
      %s131 = sphi 0, %s130
      %s145 = sphi 0, %s131
      %s149 = sphi 0, %s149
      %s151 = sphi 0, %s149
      %s152 = sphi 0, %s151
      %s166 = sphi 0, %s152
      %s170 = sphi 0, %s170
      %s172 = sphi 0, %s170
      %s173 = sphi 0, %s172
      %s187 = sphi 0, %s173
      %s191 = sphi 0, %s191
      %s193 = sphi 0, %s191
      %s194 = sphi 0, %s193
      %s208 = sphi 0, %s194
      %s214 = sphi 0, %s216
      %s217 = sphi 0, %s214
      %s218 = sphi 0, %s217
      %s234 = sphi 0, %s218
      %s240 = sphi 0, %s242
      %s243 = sphi 0, %s240
      %s244 = sphi 0, %s243
      %s260 = sphi 0, %s244
    $region4: #{tpu_custom_call.1} parent=1 // loop_header_branch
      %29 = sbr.rel (%p27) target = $region8
    $region5: #{tpu_custom_call.1} parent=1 // loop_body
      %s31 = ssub.s32 %s26, 1
      %s32 = ssub.s32 %s26, 2
      %s33 = sadd.s32 %s26, 1
      %s34 = ssub.s32 %s26, %s33
      %p35 = scmp.eq.s32.totalorder %s34, 0
      %s37 = sadd.s32 %s36, 1
      %s38 = scalar_select %p35, %s36, %s37
      %p41 = pneg %p35
      %p42 = scmp.eq.s32.totalorder %s26, 1
      %p43 = por %p41, %p42
      %p44 = scmp.ne.s32.totalorder %s36, %s39
      %p45 = scmp.eq.s32.totalorder %s26, 0
      %p46 = por %p44, %p45
      %p47 = scmp.ne.s32.totalorder %s36, %s39
      %p48 = scmp.eq.s32.totalorder %s31, 1
      %p49 = por %p47, %p48
      %p50 = scmp.ne.s32.totalorder %s39, %s40
      %p51 = scmp.eq.s32.totalorder %s31, 0
      %p52 = por %p50, %p51
      %p53 = scmp.ne.s32.totalorder %s39, %s40
      %p54 = scmp.eq.s32.totalorder %s32, 1
      %p55 = por %p53, %p54
      %p57 = scmp.ne.s32.totalorder %s40, %s56
      %p58 = scmp.eq.s32.totalorder %s32, 0
      %p59 = por %p57, %p58
      %s60 = ssub.s32 %s26, %s33
      %p61 = scmp.eq.s32.totalorder %s60, 0
      %s63 = sadd.s32 %s62, 1
      %s64 = scalar_select %p61, %s62, %s63
      %p67 = pneg %p61
      %p68 = scmp.eq.s32.totalorder %s26, 1
      %p69 = por %p67, %p68
      %p70 = scmp.ne.s32.totalorder %s62, %s65
      %p71 = scmp.eq.s32.totalorder %s26, 0
      %p72 = por %p70, %p71
      %p73 = scmp.ne.s32.totalorder %s62, %s65
      %p74 = scmp.eq.s32.totalorder %s31, 1
      %p75 = por %p73, %p74
      %p76 = scmp.ne.s32.totalorder %s65, %s66
      %p77 = scmp.eq.s32.totalorder %s31, 0
      %p78 = por %p76, %p77
      %p79 = scmp.ne.s32.totalorder %s65, %s66
      %p80 = scmp.eq.s32.totalorder %s32, 1
      %p81 = por %p79, %p80
      %p83 = scmp.ne.s32.totalorder %s66, %s82
      %p84 = scmp.eq.s32.totalorder %s32, 0
      %p85 = por %p83, %p84
      %s87 = sadd.s32 %s86, 1
      %p90 = scmp.eq.s32.totalorder %s26, 1
      %p91 = scmp.ne.s32.totalorder %s86, %s88
      %p92 = scmp.eq.s32.totalorder %s26, 0
      %p93 = por %p91, %p92
      %p94 = scmp.ne.s32.totalorder %s86, %s88
      %p95 = scmp.eq.s32.totalorder %s31, 1
      %p96 = por %p94, %p95
      %p97 = scmp.ne.s32.totalorder %s88, %s89
      %p98 = scmp.eq.s32.totalorder %s31, 0
      %p99 = por %p97, %p98
      %p100 = scmp.ne.s32.totalorder %s88, %s89
      %p101 = scmp.eq.s32.totalorder %s32, 1
      %p102 = por %p100, %p101
      %p104 = scmp.ne.s32.totalorder %s89, %s103
      %p105 = scmp.eq.s32.totalorder %s32, 0
      %p106 = por %p104, %p105
      %s108 = sadd.s32 %s107, 1
      %p111 = scmp.eq.s32.totalorder %s26, 1
      %p112 = scmp.ne.s32.totalorder %s107, %s109
      %p113 = scmp.eq.s32.totalorder %s26, 0
      %p114 = por %p112, %p113
      %p115 = scmp.ne.s32.totalorder %s107, %s109
      %p116 = scmp.eq.s32.totalorder %s31, 1
      %p117 = por %p115, %p116
      %p118 = scmp.ne.s32.totalorder %s109, %s110
      %p119 = scmp.eq.s32.totalorder %s31, 0
      %p120 = por %p118, %p119
      %p121 = scmp.ne.s32.totalorder %s109, %s110
      %p122 = scmp.eq.s32.totalorder %s32, 1
      %p123 = por %p121, %p122
      %p125 = scmp.ne.s32.totalorder %s110, %s124
      %p126 = scmp.eq.s32.totalorder %s32, 0
      %p127 = por %p125, %p126
      %s129 = sadd.s32 %s128, 1
      %p132 = scmp.eq.s32.totalorder %s26, 1
      %p133 = scmp.ne.s32.totalorder %s128, %s130
      %p134 = scmp.eq.s32.totalorder %s26, 0
      %p135 = por %p133, %p134
      %p136 = scmp.ne.s32.totalorder %s128, %s130
      %p137 = scmp.eq.s32.totalorder %s31, 1
      %p138 = por %p136, %p137
      %p139 = scmp.ne.s32.totalorder %s130, %s131
      %p140 = scmp.eq.s32.totalorder %s31, 0
      %p141 = por %p139, %p140
      %p142 = scmp.ne.s32.totalorder %s130, %s131
      %p143 = scmp.eq.s32.totalorder %s32, 1
      %p144 = por %p142, %p143
      %p146 = scmp.ne.s32.totalorder %s131, %s145
      %p147 = scmp.eq.s32.totalorder %s32, 0
      %p148 = por %p146, %p147
      %s150 = sadd.s32 %s149, 1
      %p153 = scmp.eq.s32.totalorder %s26, 1
      %p154 = scmp.ne.s32.totalorder %s149, %s151
      %p155 = scmp.eq.s32.totalorder %s26, 0
      %p156 = por %p154, %p155
      %p157 = scmp.ne.s32.totalorder %s149, %s151
      %p158 = scmp.eq.s32.totalorder %s31, 1
      %p159 = por %p157, %p158
      %p160 = scmp.ne.s32.totalorder %s151, %s152
      %p161 = scmp.eq.s32.totalorder %s31, 0
      %p162 = por %p160, %p161
      %p163 = scmp.ne.s32.totalorder %s151, %s152
      %p164 = scmp.eq.s32.totalorder %s32, 1
      %p165 = por %p163, %p164
      %p167 = scmp.ne.s32.totalorder %s152, %s166
      %p168 = scmp.eq.s32.totalorder %s32, 0
      %p169 = por %p167, %p168
      %s171 = sadd.s32 %s170, 1
      %p174 = scmp.eq.s32.totalorder %s26, 1
      %p175 = scmp.ne.s32.totalorder %s170, %s172
      %p176 = scmp.eq.s32.totalorder %s26, 0
      %p177 = por %p175, %p176
      %p178 = scmp.ne.s32.totalorder %s170, %s172
      %p179 = scmp.eq.s32.totalorder %s31, 1
      %p180 = por %p178, %p179
      %p181 = scmp.ne.s32.totalorder %s172, %s173
      %p182 = scmp.eq.s32.totalorder %s31, 0
      %p183 = por %p181, %p182
      %p184 = scmp.ne.s32.totalorder %s172, %s173
      %p185 = scmp.eq.s32.totalorder %s32, 1
      %p186 = por %p184, %p185
      %p188 = scmp.ne.s32.totalorder %s173, %s187
      %p189 = scmp.eq.s32.totalorder %s32, 0
      %p190 = por %p188, %p189
      %s192 = sadd.s32 %s191, 1
      %p195 = scmp.eq.s32.totalorder %s26, 1
      %p196 = scmp.ne.s32.totalorder %s191, %s193
      %p197 = scmp.eq.s32.totalorder %s26, 0
      %p198 = por %p196, %p197
      %p199 = scmp.ne.s32.totalorder %s191, %s193
      %p200 = scmp.eq.s32.totalorder %s31, 1
      %p201 = por %p199, %p200
      %p202 = scmp.ne.s32.totalorder %s193, %s194
      %p203 = scmp.eq.s32.totalorder %s31, 0
      %p204 = por %p202, %p203
      %p205 = scmp.ne.s32.totalorder %s193, %s194
      %p206 = scmp.eq.s32.totalorder %s32, 1
      %p207 = por %p205, %p206
      %p209 = scmp.ne.s32.totalorder %s194, %s208
      %p210 = scmp.eq.s32.totalorder %s32, 0
      %p211 = por %p209, %p210
      %s212 = ssub.s32 %s26, %s33
      %p213 = scmp.eq.s32.totalorder %s212, 0
      %s215 = sadd.s32 %s214, 1
      %s216 = scalar_select %p213, %s214, %s215
      %p219 = pneg %p213
      %p220 = scmp.eq.s32.totalorder %s26, 1
      %p221 = por %p219, %p220
      %p222 = scmp.ne.s32.totalorder %s214, %s217
      %p223 = scmp.eq.s32.totalorder %s26, 0
      %p224 = por %p222, %p223
      %p225 = scmp.ne.s32.totalorder %s214, %s217
      %p226 = scmp.eq.s32.totalorder %s31, 1
      %p227 = por %p225, %p226
      %p228 = scmp.ne.s32.totalorder %s217, %s218
      %p229 = scmp.eq.s32.totalorder %s31, 0
      %p230 = por %p228, %p229
      %p231 = scmp.ne.s32.totalorder %s217, %s218
      %p232 = scmp.eq.s32.totalorder %s32, 1
      %p233 = por %p231, %p232
      %p235 = scmp.ne.s32.totalorder %s218, %s234
      %p236 = scmp.eq.s32.totalorder %s32, 0
      %p237 = por %p235, %p236
      %s238 = ssub.s32 %s26, %s33
      %p239 = scmp.eq.s32.totalorder %s238, 0
      %s241 = sadd.s32 %s240, 1
      %s242 = scalar_select %p239, %s240, %s241
      %p245 = pneg %p239
      %p246 = scmp.eq.s32.totalorder %s26, 1
      %p247 = por %p245, %p246
      %p248 = scmp.ne.s32.totalorder %s240, %s243
      %p249 = scmp.eq.s32.totalorder %s26, 0
      %p250 = por %p248, %p249
      %p251 = scmp.ne.s32.totalorder %s240, %s243
      %p252 = scmp.eq.s32.totalorder %s31, 1
      %p253 = por %p251, %p252
      %p254 = scmp.ne.s32.totalorder %s243, %s244
      %p255 = scmp.eq.s32.totalorder %s31, 0
      %p256 = por %p254, %p255
      %p257 = scmp.ne.s32.totalorder %s243, %s244
      %p258 = scmp.eq.s32.totalorder %s32, 1
      %p259 = por %p257, %p258
      %p261 = scmp.ne.s32.totalorder %s244, %s260
      %p262 = scmp.eq.s32.totalorder %s32, 0
      %p263 = por %p261, %p262
      %p264 = scmp.le.s32.totalorder 1, %s26
      %p265 = scmp.lt.s32.totalorder %s26, 3
      %p266 = pnand %p264, %p265
      %p267 = pneg %p266
      // Predicated region
      $region9: #{tpu_custom_call.1} parent=5 // pred_check
        _
      $region10: #{tpu_custom_call.1} parent=5 // pred_check_branch
        %269 = sbr.rel (%p266) target = $region12
      $region11: #{tpu_custom_call.1} parent=5 // pred_region
        %s270 = ssub.s32 %s26, 1
        // Predicated region
        $region13: #{tpu_custom_call.1} parent=11 // pred_check
          %p271 = pneg %p99
        $region14: #{tpu_custom_call.1} parent=11 // pred_check_branch
          %273 = sbr.rel (%p271) target = $region16
        $region15: #{tpu_custom_call.1} parent=11 // pred_region
          %275 = vsyncadd [#allocation6], 0
          %s276 = sshll.u32 %s2, 4
          %s277 = int_to_ptr.hbm [resolvable:$true] %s276
          %s278 = sshll.u32 [#allocation5], 4
          %s279 = int_to_ptr.vmem [resolvable:$true] %s278
          %284 = dma.hbm_to_vmem [thread:$0]  %s277, 2048, %s279, [#allocation6], 256, 256, 16
        $region16: #{tpu_custom_call.1} parent=11 // pred_fallthru
          _
        // Predicated region
        $region17: #{tpu_custom_call.1} parent=11 // pred_check
          %p285 = pneg %p120
        $region18: #{tpu_custom_call.1} parent=11 // pred_check_branch
          %287 = sbr.rel (%p285) target = $region20
        $region19: #{tpu_custom_call.1} parent=11 // pred_region
          _
        $region20: #{tpu_custom_call.1} parent=11 // pred_fallthru
          _
        // Predicated region
        $region21: #{tpu_custom_call.1} parent=11 // pred_check
          %p288 = pneg %p141
        $region22: #{tpu_custom_call.1} parent=11 // pred_check_branch
          %290 = sbr.rel (%p288) target = $region24
        $region23: #{tpu_custom_call.1} parent=11 // pred_region
          _
        $region24: #{tpu_custom_call.1} parent=11 // pred_fallthru
          _
        // Predicated region
        $region25: #{tpu_custom_call.1} parent=11 // pred_check
          %p291 = pneg %p162
        $region26: #{tpu_custom_call.1} parent=11 // pred_check_branch
          %293 = sbr.rel (%p291) target = $region28
        $region27: #{tpu_custom_call.1} parent=11 // pred_region
          %295 = vsyncadd [#allocation6], 0
          %s297 = sshll.u32 %s5, 4
          %s298 = int_to_ptr.hbm [resolvable:$true] %s297
          %s299 = sshll.u32 [#allocation7], 4
          %s300 = int_to_ptr.vmem [resolvable:$true] %s299
          %302 = dma.hbm_to_vmem [thread:$0]  %s298, 64, %s300, [#allocation6]
        $region28: #{tpu_custom_call.1} parent=11 // pred_fallthru
          _
        // Predicated region
        $region29: #{tpu_custom_call.1} parent=11 // pred_check
          %p303 = pneg %p183
        $region30: #{tpu_custom_call.1} parent=11 // pred_check_branch
          %305 = sbr.rel (%p303) target = $region32
        $region31: #{tpu_custom_call.1} parent=11 // pred_region
          _
        $region32: #{tpu_custom_call.1} parent=11 // pred_fallthru
          _
        // Predicated region
        $region33: #{tpu_custom_call.1} parent=11 // pred_check
          %p306 = pneg %p204
        $region34: #{tpu_custom_call.1} parent=11 // pred_check_branch
          %308 = sbr.rel (%p306) target = $region36
        $region35: #{tpu_custom_call.1} parent=11 // pred_region
          _
        $region36: #{tpu_custom_call.1} parent=11 // pred_fallthru
          _
      $region12: #{tpu_custom_call.1} parent=5 // pred_fallthru
        _
      %p309 = scmp.lt.s32.totalorder %s26, 2
      // Predicated region
      $region37: #{tpu_custom_call.1} parent=5 // pred_check
        %p310 = pneg %p309
      $region38: #{tpu_custom_call.1} parent=5 // pred_check_branch
        %312 = sbr.rel (%p310) target = $region40
      $region39: #{tpu_custom_call.1} parent=5 // pred_region
        // Predicated region
        $region41: #{tpu_custom_call.1} parent=39 // pred_check
          %p313 = pneg %p46
        $region42: #{tpu_custom_call.1} parent=39 // pred_check_branch
          %315 = sbr.rel (%p313) target = $region44
        $region43: #{tpu_custom_call.1} parent=39 // pred_region
          %p316 = scmp.lt.s32.totalorder %s26, 1
          %s317 = scalar_select %p316, %s26, 1
          %s318 = smul.addr %s317, 2
          %s319 = smul.addr %s318, 4
          %s320 = scalar_lea.vmem %s0, %s319
        $region44: #{tpu_custom_call.1} parent=39 // pred_fallthru
          _
        // Predicated region
        $region45: #{tpu_custom_call.1} parent=39 // pred_check
          %p321 = pneg %p72
        $region46: #{tpu_custom_call.1} parent=39 // pred_check_branch
          %323 = sbr.rel (%p321) target = $region48
        $region47: #{tpu_custom_call.1} parent=39 // pred_region
          %s324 = sand.u32 %s62, 1
          %s325 = scalar_lea.sflag [#allocation3], %s324
          %s326 = sand.u32 %s62, 1
          %s327 = smul.addr %s326, 8
          %s328 = scalar_lea.vmem [#allocation2], %s327
          %330 = vsyncadd %s325, 0
          %s331 = smul.addr %s26, 8
          %s332 = scalar_lea.hbm %s1, %s331
          %s334 = sshll.u32 %s332, 4
          %s335 = int_to_ptr.hbm [resolvable:$true] %s334
          %s336 = sshll.u32 %s328, 4
          %s337 = int_to_ptr.vmem [resolvable:$true] %s336
          %339 = dma.hbm_to_vmem [thread:$0]  %s335, 128, %s337, %s325
        $region48: #{tpu_custom_call.1} parent=39 // pred_fallthru
          _
      $region40: #{tpu_custom_call.1} parent=5 // pred_fallthru
        _
      %p340 = scmp.le.s32.totalorder 1, %s26
      %p341 = scmp.lt.s32.totalorder %s26, 3
      %p342 = pnand %p340, %p341
      %p343 = pneg %p342
      // Predicated region
      $region49: #{tpu_custom_call.1} parent=5 // pred_check
        _
      $region50: #{tpu_custom_call.1} parent=5 // pred_check_branch
        %345 = sbr.rel (%p342) target = $region52
      $region51: #{tpu_custom_call.1} parent=5 // pred_region
        %s346 = ssub.s32 %s26, 1
        %s347 = sand.u32 %s65, 1
        %s348 = scalar_lea.sflag [#allocation3], %s347
        %s349 = sand.u32 %s65, 1
        %s350 = smul.addr %s349, 8
        %s351 = scalar_lea.vmem [#allocation2], %s350
        // Predicated region
        $region53: #{tpu_custom_call.1} parent=51 // pred_check
          %p352 = pneg %p78
        $region54: #{tpu_custom_call.1} parent=51 // pred_check_branch
          %354 = sbr.rel (%p352) target = $region56
        $region55: #{tpu_custom_call.1} parent=51 // pred_region
          %356 = dma.done %s348, 128
        $region56: #{tpu_custom_call.1} parent=51 // pred_fallthru
          _
        // Predicated region
        $region57: #{tpu_custom_call.1} parent=51 // pred_check
          %p357 = pneg %p99
        $region58: #{tpu_custom_call.1} parent=51 // pred_check_branch
          %359 = sbr.rel (%p357) target = $region60
        $region59: #{tpu_custom_call.1} parent=51 // pred_region
          %361 = dma.done [#allocation6], 2048
        $region60: #{tpu_custom_call.1} parent=51 // pred_fallthru
          _
        // Predicated region
        $region61: #{tpu_custom_call.1} parent=51 // pred_check
          %p362 = pneg %p162
        $region62: #{tpu_custom_call.1} parent=51 // pred_check_branch
          %364 = sbr.rel (%p362) target = $region64
        $region63: #{tpu_custom_call.1} parent=51 // pred_region
          %366 = dma.done [#allocation6], 64
        $region64: #{tpu_custom_call.1} parent=51 // pred_fallthru
          _
        %p367 = scmp.lt.s32.totalorder %s31, 1
        %s368 = scalar_select %p367, %s31, 1
        %s369 = smul.addr %s368, 2
        %s370 = smul.addr %s369, 4
        %s371 = scalar_lea.vmem %s0, %s370
        %p372 = pneg %p52
        %p373 = pneg %p49
        %s374 = sand.u32 %s65, 1
        %s375 = scalar_lea.sflag [#allocation3], %s374
        %s376 = sand.u32 %s65, 1
        %s377 = smul.addr %s376, 8
        %s378 = scalar_lea.vmem [#allocation2], %s377
        %p379 = pneg %p78
        %p380 = pneg %p75
        %p381 = pneg %p99
        %p382 = pneg %p96
        %p383 = pneg %p120
        %p384 = pneg %p117
        %p385 = pneg %p141
        %p386 = pneg %p138
        %p387 = pneg %p162
        %p388 = pneg %p159
        %p389 = pneg %p183
        %p390 = pneg %p180
        %p391 = pneg %p204
        %p392 = pneg %p201
        %p393 = pneg %p230
        %p394 = pneg %p227
        %s395 = sand.u32 %s217, 1
        %s396 = scalar_lea.sflag [#allocation4], %s395
        %s397 = sand.u32 %s217, 1
        %s398 = smul.addr %s397, 8
        %s399 = scalar_lea.vmem [#allocation8], %s398
        %p400 = pneg %p256
        %p401 = pneg %p253
        %s402 = sand.u32 %s243, 1
        %s403 = scalar_lea.sflag [#allocation10], %s402
        %s404 = sand.u32 %s243, 1
        %s405 = smul.addr %s404, 2
        %s406 = scalar_lea.vmem [#allocation9], %s405
        %p407 = scmp.lt.s32.totalorder %s31, 1
        %s408 = scalar_select %p407, %s31, 1
        %s409 = smul.addr %s408, 2
        %s410 = smul.addr %s409, 4
        %s411 = scalar_lea.vmem %s0, %s410
        %v412 = vld [vmem:[%s411] sm:$0xff]
        %v413 = vld [vmem:[%s351] sm:$0xff]
        %v414 = vld [vmem:[%s7] sm:$0xff]
        %v415 = vld [vmem:[%s7 + $0x8] sm:$0x1]
        %v416 = vld [vmem:[#allocation5] sm:$0xff]
        %v417 = vld [vmem:[#allocation5 + $0x8] sm:$0xff]
        %v418 = vld [vmem:[#allocation5 + $0x10] sm:$0xff]
        %v419 = vld [vmem:[#allocation5 + $0x18] sm:$0xff]
        %v420 = vld [vmem:[#allocation5 + $0x20] sm:$0xff]
        %v421 = vld [vmem:[#allocation5 + $0x28] sm:$0xff]
        %v422 = vld [vmem:[#allocation5 + $0x30] sm:$0xff]
        %v423 = vld [vmem:[#allocation5 + $0x38] sm:$0xff]
        %v424 = vld [vmem:[#allocation5 + $0x40] sm:$0xff]
        %v425 = vld [vmem:[#allocation5 + $0x48] sm:$0xff]
        %v426 = vld [vmem:[#allocation5 + $0x50] sm:$0xff]
        %v427 = vld [vmem:[#allocation5 + $0x58] sm:$0xff]
        %v428 = vld [vmem:[#allocation5 + $0x60] sm:$0xff]
        %v429 = vld [vmem:[#allocation5 + $0x68] sm:$0xff]
        %v430 = vld [vmem:[#allocation5 + $0x70] sm:$0xff]
        %v431 = vld [vmem:[#allocation5 + $0x78] sm:$0xff]
        %vm432 = vcmask 523264
        %v434 = vsel %vm432, %v413, 0
        %436 = vmatpush.msra.mxu0 0.0
        %437 = vmatpush.msra.mxu0 0.0
        %438 = vmatpush.msra.mxu0 0.0
        %439 = vmatpush.msra.mxu0 0.0
        %440 = vmatpush.msra.mxu0 0.0
        %441 = vmatpush.msra.mxu0 0.0
        %442 = vmatpush.msra.mxu0 0.0
        %443 = vmatpush.msra.mxu0 0.0
        %444 = vmatpush.msra.mxu0 %v430
        %445 = vmatpush.msra.mxu0 %v428
        %446 = vmatpush.msra.mxu0 %v426
        %447 = vmatpush.msra.mxu0 %v424
        %448 = vmatpush.msra.mxu0 %v422
        %449 = vmatpush.msra.mxu0 %v420
        %450 = vmatpush.msra.mxu0 %v418
        %451 = vmatpush.msra.mxu0 %v416
        %452 = vmatmul.f32.gmra.mxu0 %v434
        %v453 = vpop.f32.mrf.mxu0
        %v454 = vadd.f32 0.0, %v453
        %455 = vdwg.mxu0
        %456 = vmatpush.msra.mxu0 0.0
        %457 = vmatpush.msra.mxu0 0.0
        %458 = vmatpush.msra.mxu0 0.0
        %459 = vmatpush.msra.mxu0 0.0
        %460 = vmatpush.msra.mxu0 0.0
        %461 = vmatpush.msra.mxu0 0.0
        %462 = vmatpush.msra.mxu0 0.0
        %463 = vmatpush.msra.mxu0 0.0
        %464 = vmatpush.msra.mxu0 %v431
        %465 = vmatpush.msra.mxu0 %v429
        %466 = vmatpush.msra.mxu0 %v427
        %467 = vmatpush.msra.mxu0 %v425
        %468 = vmatpush.msra.mxu0 %v423
        %469 = vmatpush.msra.mxu0 %v421
        %470 = vmatpush.msra.mxu0 %v419
        %471 = vmatpush.msra.mxu0 %v417
        %472 = vmatmul.f32.gmra.mxu0 %v434
        %v473 = vpop.f32.mrf.mxu0
        %v474 = vadd.f32 0.0, %v473
        %475 = vdwg.mxu0
        %v476 = vld [vmem:[%s3] sm:$0x3]
        %478 = vst [vmem:[#allocation1] ss:$2 sm:$0xff] %v412
        %v479 = vld.sshfl [vmem:[#allocation1] sm:$0xff pattern:$0x75316420]
        %v480 = vld.sshfl [vmem:[#allocation1 + $0x8] sm:$0xff pattern:$0x75316420]
        %vm481 = vcmask 31744
        %v483 = vsel %vm481, %v476, 0
        %vm485 = vcmask 1043456
        %v486 = vsel %vm485, %v479, 0
        %v488 = vsel %vm485, %v480, 0
        %490 = vmatpush.msra.mxu0 0.0
        %491 = vmatpush.msra.mxu0 0.0
        %492 = vmatpush.msra.mxu0 0.0
        %493 = vmatpush.msra.mxu0 0.0
        %494 = vmatpush.msra.mxu0 0.0
        %495 = vmatpush.msra.mxu0 0.0
        %496 = vmatpush.msra.mxu0 0.0
        %497 = vmatpush.msra.mxu0 0.0
        %498 = vmatpush.msra.mxu0 0.0
        %499 = vmatpush.msra.mxu0 0.0
        %500 = vmatpush.msra.mxu0 0.0
        %501 = vmatpush.msra.mxu0 0.0
        %502 = vmatpush.msra.mxu0 0.0
        %503 = vmatpush.msra.mxu0 0.0
        %504 = vmatpush.msra.mxu0 0.0
        %505 = vmatpush.msra.mxu0 %v486
        %506 = vmatmul.f32.gmra.mxu0 %v483
        %v507 = vpop.f32.mrf.mxu0
        %v508 = vadd.f32 0.0, %v507
        %509 = vdwg.mxu0
        %510 = vmatpush.msra.mxu0 0.0
        %511 = vmatpush.msra.mxu0 0.0
        %512 = vmatpush.msra.mxu0 0.0
        %513 = vmatpush.msra.mxu0 0.0
        %514 = vmatpush.msra.mxu0 0.0
        %515 = vmatpush.msra.mxu0 0.0
        %516 = vmatpush.msra.mxu0 0.0
        %517 = vmatpush.msra.mxu0 0.0
        %518 = vmatpush.msra.mxu0 0.0
        %519 = vmatpush.msra.mxu0 0.0
        %520 = vmatpush.msra.mxu0 0.0
        %521 = vmatpush.msra.mxu0 0.0
        %522 = vmatpush.msra.mxu0 0.0
        %523 = vmatpush.msra.mxu0 0.0
        %524 = vmatpush.msra.mxu0 0.0
        %525 = vmatpush.msra.mxu0 %v488
        %526 = vmatmul.f32.gmra.mxu0 %v483
        %v527 = vpop.f32.mrf.mxu0
        %v528 = vadd.f32 0.0, %v527
        %529 = vdwg.mxu0
        %v530 = vld [vmem:[%s4] sm:$0x3]
        %vm531 = vcmask 64512
        %v533 = vsel %vm531, %v530, 0
        %535 = vmatpush.msra.mxu0 0.0
        %536 = vmatpush.msra.mxu0 0.0
        %537 = vmatpush.msra.mxu0 0.0
        %538 = vmatpush.msra.mxu0 0.0
        %539 = vmatpush.msra.mxu0 0.0
        %540 = vmatpush.msra.mxu0 0.0
        %541 = vmatpush.msra.mxu0 0.0
        %542 = vmatpush.msra.mxu0 0.0
        %543 = vmatpush.msra.mxu0 0.0
        %544 = vmatpush.msra.mxu0 0.0
        %545 = vmatpush.msra.mxu0 0.0
        %546 = vmatpush.msra.mxu0 0.0
        %547 = vmatpush.msra.mxu0 0.0
        %548 = vmatpush.msra.mxu0 0.0
        %549 = vmatpush.msra.mxu0 0.0
        %550 = vmatpush.msra.mxu0 %v454
        %551 = vmatmul.f32.gmra.mxu0 %v533
        %v552 = vpop.f32.mrf.mxu0
        %v553 = vadd.f32 0.0, %v552
        %554 = vdwg.mxu0
        %555 = vmatpush.msra.mxu0 0.0
        %556 = vmatpush.msra.mxu0 0.0
        %557 = vmatpush.msra.mxu0 0.0
        %558 = vmatpush.msra.mxu0 0.0
        %559 = vmatpush.msra.mxu0 0.0
        %560 = vmatpush.msra.mxu0 0.0
        %561 = vmatpush.msra.mxu0 0.0
        %562 = vmatpush.msra.mxu0 0.0
        %563 = vmatpush.msra.mxu0 0.0
        %564 = vmatpush.msra.mxu0 0.0
        %565 = vmatpush.msra.mxu0 0.0
        %566 = vmatpush.msra.mxu0 0.0
        %567 = vmatpush.msra.mxu0 0.0
        %568 = vmatpush.msra.mxu0 0.0
        %569 = vmatpush.msra.mxu0 0.0
        %570 = vmatpush.msra.mxu0 %v474
        %571 = vmatmul.f32.gmra.mxu0 %v533
        %v572 = vpop.f32.mrf.mxu0
        %v573 = vadd.f32 0.0, %v572
        %574 = vdwg.mxu0
        %vm575 = vcmask 1041408
        %v576 = vsel %vm575, %v508, 0.0
        %v577 = vsel %vm575, %v528, 0.0
        %v578 = vadd.f32 %v576, %v577
        %579 = vadd.xlane.f32.xlu0 %v578
        %v580 = vpop.xlane.xlu0 %579
        %v581 = vrcp.pop 256.0
        %v582 = vmul.f32 256.0, %v581
        %v583 = vsub.f32 1.0, %v582
        %v584 = vmul.f32 %v581, %v583
        %v585 = vadd.f32 %v581, %v584
        %vm586 = vweird.f32 %v581
        %v587 = vsel %vm586, %v581, %v585
        %v588 = vmul.f32 %v580, %v587
        %v589 = vsub.f32 %v508, %v588
        %v590 = vsub.f32 %v528, %v588
        %v591 = vmul.f32 %v589, %v589
        %v592 = vmul.f32 %v590, %v590
        %v593 = vsel %vm575, %v591, 0.0
        %v594 = vsel %vm575, %v592, 0.0
        %v595 = vadd.f32 %v593, %v594
        %596 = vadd.xlane.f32.xlu0 %v595
        %v597 = vpop.xlane.xlu0 %596
        %v598 = vmul.f32 %v597, %v587
        %v599 = vadd.f32 %v598, 1e-05
        %v600 = vrsqrt.pop %v599
        %v601 = vmul.f32 %v600, %v599
        %v602 = vmul.f32 %v601, %v600
        %v603 = vmul.f32 0.5, %v602
        %v604 = vsub.f32 1.5, %v603
        %v605 = vmul.f32 %v600, %v604
        %vm606 = vweird.f32 %v599
        %vm607 = vweird.f32 %v600
        %vm608 = vmor %vm606, %vm607
        %v609 = vsel %vm608, %v600, %v605
        %v610 = vmul.f32 %v414, %v609
        %v611 = vmul.f32 %v588, %v610
        %613 = vrot.lane.b32.xlu0 %v611, 1
        %v614 = vpop.permute.xlu0 %613
        %v616 = vsub.f32 %v414, %v614
        %618 = vset.pattern.permute.xlu0 0
        %619 = vperm.xlu0 %618, %v610
        %v620 = vpop.permute.xlu0 %619
        %v622 = vmul.f32 %v508, %v620
        %v623 = vmul.f32 %v528, %v620
        %625 = vset.pattern.permute.xlu0 1
        %626 = vperm.xlu0 %625, %v616
        %v627 = vpop.permute.xlu0 %626
        %v629 = vadd.f32 %v622, %v627
        %v630 = vadd.f32 %v623, %v627
        %v631 = vsel %vm575, %v553, 0.0
        %v632 = vsel %vm575, %v573, 0.0
        %v633 = vadd.f32 %v631, %v632
        %634 = vadd.xlane.f32.xlu0 %v633
        %v635 = vpop.xlane.xlu0 %634
        %v636 = vmul.f32 %v635, %v587
        %v637 = vsub.f32 %v553, %v636
        %v638 = vsub.f32 %v573, %v636
        %v639 = vmul.f32 %v637, %v637
        %v640 = vmul.f32 %v638, %v638
        %v641 = vsel %vm575, %v639, 0.0
        %v642 = vsel %vm575, %v640, 0.0
        %v643 = vadd.f32 %v641, %v642
        %644 = vadd.xlane.f32.xlu0 %v643
        %v645 = vpop.xlane.xlu0 %644
        %v646 = vmul.f32 %v645, %v587
        %v647 = vadd.f32 %v646, 1e-05
        %v648 = vrsqrt.pop %v647
        %v649 = vmul.f32 %v648, %v647
        %v650 = vmul.f32 %v649, %v648
        %v651 = vmul.f32 0.5, %v650
        %v652 = vsub.f32 1.5, %v651
        %v653 = vmul.f32 %v648, %v652
        %vm654 = vweird.f32 %v647
        %vm655 = vweird.f32 %v648
        %vm656 = vmor %vm654, %vm655
        %v657 = vsel %vm656, %v648, %v653
        %v659 = vrot.slane %v657, 6
        %v661 = vmul.f32 %v414, %v659
        %v663 = vrot.slane %v661, 2
        %v665 = vmul.f32 %v636, %v663
        %v667 = vrot.slane %v665, 6
        %668 = vrot.lane.b32.xlu0 %v667, 1
        %v669 = vpop.permute.xlu0 %668
        %v671 = vsub.f32 %v414, %v669
        %672 = vset.pattern.permute.xlu0 0
        %673 = vperm.xlu0 %672, %v661
        %v674 = vpop.permute.xlu0 %673
        %v675 = vrot.slane %v674, 2
        %v677 = vmul.f32 %v553, %v675
        %v678 = vmul.f32 %v573, %v675
        %680 = vset.pattern.permute.xlu0 1
        %681 = vperm.xlu0 %680, %v671
        %v682 = vpop.permute.xlu0 %681
        %v683 = vrot.slane %v682, 2
        %v685 = vadd.f32 %v677, %v683
        %v686 = vadd.f32 %v678, %v683
        %v687 = vadd.f32 %v629, %v685
        %v688 = vadd.f32 %v630, %v686
        %vm689 = vcmp.ge.f32.partialorder %v687, 0.0
        %vm690 = vcmp.ge.f32.partialorder %v688, 0.0
        %v691 = vmul.f32 %v687, 0.2
        %v692 = vmul.f32 %v688, 0.2
        %v693 = vsel %vm689, %v687, %v691
        %v694 = vsel %vm690, %v688, %v692
        %v695 = vld [vmem:[%s6] sm:$0x3]
        %697 = vset.pattern.permute.xlu0 0
        %698 = vperm.xlu0 %697, %v695
        %v699 = vpop.permute.xlu0 %698
        %v701 = vmul.f32 %v693, %v699
        %v702 = vmul.f32 %v694, %v699
        %v703 = vsel %vm575, %v701, 0.0
        %v704 = vrot.slane %v703, 4
        %v705 = vadd.f32 %v703, %v704
        %v706 = vrot.slane %v705, 2
        %v707 = vadd.f32 %v705, %v706
        %v708 = vrot.slane %v707, 1
        %v709 = vadd.f32 %v707, %v708
        %v710 = vsel %vm575, %v702, 0.0
        %v711 = vrot.slane %v710, 4
        %v712 = vadd.f32 %v710, %v711
        %v713 = vrot.slane %v712, 2
        %v714 = vadd.f32 %v712, %v713
        %v715 = vrot.slane %v714, 1
        %v716 = vadd.f32 %v714, %v715
        %v717 = vadd.f32 %v709, %v716
        %718 = vadd.xlane.f32.xlu0 %v717
        %v719 = vpop.xlane.xlu0 %718
        %v720 = vmul.f32 %v719, %v587
        %v721 = vsub.f32 %v709, %v720
        %v722 = vsub.f32 %v716, %v720
        %v723 = vmul.f32 %v721, %v721
        %v724 = vmul.f32 %v722, %v722
        %v725 = vadd.f32 %v723, %v724
        %726 = vadd.xlane.f32.xlu0 %v725
        %v727 = vpop.xlane.xlu0 %726
        %v728 = vmul.f32 %v727, %v587
        %v729 = vadd.f32 %v728, 1e-05
        %v730 = vrsqrt.pop %v729
        %v731 = vmul.f32 %v730, %v729
        %v732 = vmul.f32 %v731, %v730
        %v733 = vmul.f32 0.5, %v732
        %v734 = vsub.f32 1.5, %v733
        %v735 = vmul.f32 %v730, %v734
        %vm736 = vweird.f32 %v729
        %vm737 = vweird.f32 %v730
        %vm738 = vmor %vm736, %vm737
        %v739 = vsel %vm738, %v730, %v735
        %v740 = vmul.f32 %v414, %v739
        %v741 = vmul.f32 %v720, %v740
        %743 = vrot.lane.b32.xlu0 %v741, 1
        %v744 = vpop.permute.xlu0 %743
        %v746 = vsub.f32 %v414, %v744
        %748 = vset.pattern.permute.xlu0 0
        %749 = vperm.xlu0 %748, %v740
        %v750 = vpop.permute.xlu0 %749
        %v752 = vmul.f32 %v709, %v750
        %v753 = vmul.f32 %v716, %v750
        %755 = vset.pattern.permute.xlu0 1
        %756 = vperm.xlu0 %755, %v746
        %v757 = vpop.permute.xlu0 %756
        %v759 = vadd.f32 %v752, %v757
        %v760 = vadd.f32 %v753, %v757
        %v761 = vxor.u32 %v759, 2147483648
        %v762 = vxor.u32 %v760, 2147483648
        %v763 = vmul.f32 %v761, 1.442695
        %v764 = vpow.pop %v763
        %v765 = vmul.f32 %v762, 1.442695
        %v766 = vpow.pop %v765
        %v767 = vadd.f32 %v764, 1.0
        %v768 = vadd.f32 %v766, 1.0
        %v769 = vrcp.pop %v767
        %v770 = vmul.f32 %v767, %v769
        %v771 = vsub.f32 1.0, %v770
        %v772 = vmul.f32 %v769, %v771
        %v773 = vadd.f32 %v769, %v772
        %vm774 = vweird.f32 %v767
        %vm775 = vweird.f32 %v769
        %vm776 = vmor %vm774, %vm775
        %v777 = vsel %vm776, %v769, %v773
        %v778 = vand.u32 2147483647, %v767
        %vm779 = vcmp.eq.f32.partialorder %v778, 8.507059e+37
        %v780 = vand.u32 %v767, 2147483648
        %v781 = vor.u32 1.1754944e-38, %v780
        %v782 = vsel %vm779, %v781, %v777
        %v783 = vmul.f32 1.0, %v782
        %v784 = vrcp.pop %v768
        %v785 = vmul.f32 %v768, %v784
        %v786 = vsub.f32 1.0, %v785
        %v787 = vmul.f32 %v784, %v786
        %v788 = vadd.f32 %v784, %v787
        %vm789 = vweird.f32 %v768
        %vm790 = vweird.f32 %v784
        %vm791 = vmor %vm789, %vm790
        %v792 = vsel %vm791, %v784, %v788
        %v793 = vand.u32 2147483647, %v768
        %vm794 = vcmp.eq.f32.partialorder %v793, 8.507059e+37
        %v795 = vand.u32 %v768, 2147483648
        %v796 = vor.u32 1.1754944e-38, %v795
        %v797 = vsel %vm794, %v796, %v792
        %v798 = vmul.f32 1.0, %v797
        %801 = vst [vmem:[#allocation1] sm:$0xff] %v783
        %802 = vst [vmem:[#allocation1 + $0x9] sm:$0xff] %v798
        %s803 = scalar_lea.vmem [#allocation1], 4
        %v804 = vld [vmem:[%s803] ss:$9 sm:$0xff]
        %v806 = vlaneseq
        %vm807 = vcmp.ge.s32.totalorder %v806, 0
        %vm808 = vcmp.lt.s32.totalorder %v806, 256
        %vm809 = vmand %vm807, %vm808
        %810 = vst.msk [vmem:[%s406] sm:$0x3] %vm809, %v804
        %v811 = vperm.slane %v783, 4
        %v812 = vperm.slane %v798, 4
        %813 = vst [vmem:[#allocation1] ss:$2 sm:$0xff] %v412
        %v814 = vld.sshfl [vmem:[#allocation1] sm:$0xff pattern:$0x75316420]
        %v815 = vld.sshfl [vmem:[#allocation1 + $0x8] sm:$0xff pattern:$0x75316420]
        %v818 = vmul.f32 %v811, %v814
        %v819 = vmul.f32 %v812, %v815
        %v820 = vld [vmem:[#allocation7] sm:$0xf]
        %v822 = vsel %vm481, %v820, 0
        %v825 = vsel %vm485, %v818, 0
        %v828 = vsel %vm485, %v819, 0
        %830 = vmatpush.msra.mxu0 0.0
        %831 = vmatpush.msra.mxu0 0.0
        %832 = vmatpush.msra.mxu0 0.0
        %833 = vmatpush.msra.mxu0 0.0
        %834 = vmatpush.msra.mxu0 0.0
        %835 = vmatpush.msra.mxu0 0.0
        %836 = vmatpush.msra.mxu0 0.0
        %837 = vmatpush.msra.mxu0 0.0
        %838 = vmatpush.msra.mxu0 0.0
        %839 = vmatpush.msra.mxu0 0.0
        %840 = vmatpush.msra.mxu0 0.0
        %841 = vmatpush.msra.mxu0 0.0
        %842 = vmatpush.msra.mxu0 0.0
        %843 = vmatpush.msra.mxu0 0.0
        %844 = vmatpush.msra.mxu0 0.0
        %845 = vmatpush.msra.mxu0 %v825
        %846 = vmatmul.f32.gmra.mxu0 %v822
        %v847 = vpop.f32.mrf.mxu0
        %v848 = vadd.f32 0.0, %v847
        %849 = vdwg.mxu0
        %850 = vmatpush.msra.mxu0 0.0
        %851 = vmatpush.msra.mxu0 0.0
        %852 = vmatpush.msra.mxu0 0.0
        %853 = vmatpush.msra.mxu0 0.0
        %854 = vmatpush.msra.mxu0 0.0
        %855 = vmatpush.msra.mxu0 0.0
        %856 = vmatpush.msra.mxu0 0.0
        %857 = vmatpush.msra.mxu0 0.0
        %858 = vmatpush.msra.mxu0 0.0
        %859 = vmatpush.msra.mxu0 0.0
        %860 = vmatpush.msra.mxu0 0.0
        %861 = vmatpush.msra.mxu0 0.0
        %862 = vmatpush.msra.mxu0 0.0
        %863 = vmatpush.msra.mxu0 0.0
        %864 = vmatpush.msra.mxu0 0.0
        %865 = vmatpush.msra.mxu0 %v828
        %866 = vmatmul.f32.gmra.mxu0 %v822
        %v867 = vpop.f32.mrf.mxu0
        %v868 = vadd.f32 0.0, %v867
        %869 = vdwg.mxu0
        %v870 = vsel %vm485, %v848, 0.0
        %v871 = vsel %vm485, %v868, 0.0
        %v872 = vadd.f32 %v870, %v871
        %873 = vadd.xlane.f32.xlu0 %v872
        %v874 = vpop.xlane.xlu0 %873
        %v875 = vmul.f32 %v874, %v587
        %v876 = vsub.f32 %v848, %v875
        %v877 = vsub.f32 %v868, %v875
        %v878 = vmul.f32 %v876, %v876
        %v879 = vmul.f32 %v877, %v877
        %v880 = vsel %vm485, %v878, 0.0
        %v881 = vsel %vm485, %v879, 0.0
        %v882 = vadd.f32 %v880, %v881
        %883 = vadd.xlane.f32.xlu0 %v882
        %v884 = vpop.xlane.xlu0 %883
        %v885 = vmul.f32 %v884, %v587
        %v886 = vadd.f32 %v885, 1e-05
        %v887 = vrsqrt.pop %v886
        %v888 = vmul.f32 %v887, %v886
        %v889 = vmul.f32 %v888, %v887
        %v890 = vmul.f32 0.5, %v889
        %v891 = vsub.f32 1.5, %v890
        %v892 = vmul.f32 %v887, %v891
        %vm893 = vweird.f32 %v886
        %vm894 = vweird.f32 %v887
        %vm895 = vmor %vm893, %vm894
        %v896 = vsel %vm895, %v887, %v892
        %v898 = vrot.slane %v896, 3
        %v900 = vmul.f32 %v414, %v898
        %v901 = vmul.f32 %v415, %v898
        %vm904 = vcmask 1042432
        %v905 = vrot.slane %v900, 5
        %v906 = vrot.slane %v901, 5
        %v907 = vsel %vm904, %v905, %v906
        %v909 = vmul.f32 %v875, %v907
        %v911 = vrot.slane %v909, 3
        %912 = vrot.lane.b32.xlu0 %v911, 1
        %v913 = vpop.permute.xlu0 %912
        %v915 = vsub.f32 %v414, %v913
        %v916 = vsub.f32 %v415, %v913
        %917 = vset.pattern.permute.xlu0 0
        %918 = vperm.xlu0 %917, %v900
        %v919 = vpop.permute.xlu0 %918
        %920 = vset.pattern.permute.xlu0 0
        %921 = vperm.xlu0 %920, %v901
        %v922 = vpop.permute.xlu0 %921
        %v923 = vrot.slane %v919, 5
        %v924 = vrot.slane %v922, 5
        %v925 = vsel %vm904, %v923, %v924
        %v927 = vmul.f32 %v848, %v925
        %v928 = vmul.f32 %v868, %v925
        %930 = vset.pattern.permute.xlu0 1
        %931 = vperm.xlu0 %930, %v915
        %v932 = vpop.permute.xlu0 %931
        %934 = vset.pattern.permute.xlu0 1
        %935 = vperm.xlu0 %934, %v916
        %v936 = vpop.permute.xlu0 %935
        %v937 = vrot.slane %v932, 5
        %v938 = vrot.slane %v936, 5
        %v939 = vsel %vm904, %v937, %v938
        %v941 = vadd.f32 %v927, %v939
        %v942 = vadd.f32 %v928, %v939
        %v945 = vrot.slane %v942, 4
        %v946 = vsel %vm485, %v941, %v945
        %948 = vst [vmem:[%s399] sm:$0xff] %v946
        %s949 = sand.u32 %s217, 1
        %s950 = scalar_lea.sflag [#allocation4], %s949
        %s951 = sand.u32 %s217, 1
        %s952 = smul.addr %s951, 8
        %s953 = scalar_lea.vmem [#allocation8], %s952
        %s954 = sand.u32 %s243, 1
        %s955 = scalar_lea.sflag [#allocation10], %s954
        %s956 = sand.u32 %s243, 1
        %s957 = smul.addr %s956, 2
        %s958 = scalar_lea.vmem [#allocation9], %s957
        // Predicated region
        $region65: #{tpu_custom_call.1} parent=51 // pred_check
          %p959 = pneg %p227
        $region66: #{tpu_custom_call.1} parent=51 // pred_check_branch
          %961 = sbr.rel (%p959) target = $region68
        $region67: #{tpu_custom_call.1} parent=51 // pred_region
          %963 = vsyncadd %s950, 0
          %s964 = smul.addr %s31, 2
          %s965 = smul.addr %s964, 4
          %s966 = scalar_lea.hbm %s8, %s965
          %s968 = sshll.u32 %s953, 4
          %s969 = int_to_ptr.vmem [resolvable:$true] %s968
          %s970 = sshll.u32 %s966, 4
          %s971 = int_to_ptr.hbm [resolvable:$true] %s970
          %973 = dma.vmem_to_hbm [thread:$0]  %s969, 128, %s971, %s950
        $region68: #{tpu_custom_call.1} parent=51 // pred_fallthru
          _
        // Predicated region
        $region69: #{tpu_custom_call.1} parent=51 // pred_check
          %p974 = pneg %p253
        $region70: #{tpu_custom_call.1} parent=51 // pred_check_branch
          %976 = sbr.rel (%p974) target = $region72
        $region71: #{tpu_custom_call.1} parent=51 // pred_region
          %978 = vsyncadd %s955, 0
          %s979 = smul.addr %s31, 2
          %s980 = scalar_lea.hbm %s9, %s979
          %s982 = sshll.u32 %s958, 4
          %s983 = int_to_ptr.vmem [resolvable:$true] %s982
          %s984 = sshll.u32 %s980, 4
          %s985 = int_to_ptr.hbm [resolvable:$true] %s984
          %987 = dma.vmem_to_hbm [thread:$0]  %s983, 32, %s985, %s955
        $region72: #{tpu_custom_call.1} parent=51 // pred_fallthru
          _
      $region52: #{tpu_custom_call.1} parent=5 // pred_fallthru
        _
      %p988 = scmp.le.s32.totalorder 2, %s26
      // Predicated region
      $region73: #{tpu_custom_call.1} parent=5 // pred_check
        %p989 = pneg %p988
      $region74: #{tpu_custom_call.1} parent=5 // pred_check_branch
        %991 = sbr.rel (%p989) target = $region76
      $region75: #{tpu_custom_call.1} parent=5 // pred_region
        %s992 = ssub.s32 %s26, 2
        // Predicated region
        $region77: #{tpu_custom_call.1} parent=75 // pred_check
          %p993 = pneg %p233
        $region78: #{tpu_custom_call.1} parent=75 // pred_check_branch
          %995 = sbr.rel (%p993) target = $region80
        $region79: #{tpu_custom_call.1} parent=75 // pred_region
          %s996 = sand.u32 %s218, 1
          %s997 = scalar_lea.sflag [#allocation4], %s996
          %s998 = sand.u32 %s218, 1
          %s999 = smul.addr %s998, 8
          %s1000 = scalar_lea.vmem [#allocation8], %s999
          %1002 = dma.done %s997, 128
        $region80: #{tpu_custom_call.1} parent=75 // pred_fallthru
          _
        // Predicated region
        $region81: #{tpu_custom_call.1} parent=75 // pred_check
          %p1003 = pneg %p259
        $region82: #{tpu_custom_call.1} parent=75 // pred_check_branch
          %1005 = sbr.rel (%p1003) target = $region84
        $region83: #{tpu_custom_call.1} parent=75 // pred_region
          %s1006 = sand.u32 %s244, 1
          %s1007 = scalar_lea.sflag [#allocation10], %s1006
          %s1008 = sand.u32 %s244, 1
          %s1009 = smul.addr %s1008, 2
          %s1010 = scalar_lea.vmem [#allocation9], %s1009
          %1012 = dma.done %s1007, 32
        $region84: #{tpu_custom_call.1} parent=75 // pred_fallthru
          _
      $region76: #{tpu_custom_call.1} parent=5 // pred_fallthru
        _
    $region6: #{tpu_custom_call.1} parent=1 // loop_footer
      %s30 = sadd.s32 1, %s26
    $region7: #{tpu_custom_call.1} parent=1 // loop_footer_branch
      %25 = sbr.rel target = $region3
    $region8: #{tpu_custom_call.1} parent=1 // loop_exit
      _
    %1013 = vsyncpa [#allocation3], 1
    %s1014 = scalar_lea.sflag [#allocation3], 1
    %1015 = vsyncpa %s1014, 1
    %1016 = vsyncpa [#allocation6], 1
    %1017 = vsyncpa [#allocation4], 1
    %s1018 = scalar_lea.sflag [#allocation4], 1
    %1019 = vsyncpa %s1018, 1
    %1020 = vsyncpa [#allocation10], 1
    %s1021 = scalar_lea.sflag [#allocation10], 1
    %1022 = vsyncpa %s1021, 1

</llo_original>
